<compile_context>
chip_gen: v7x
topology: tpu7x:2x2x1
jax: 0.10.0
libtpu: 0.0.40
codegen_flags: <defaults>
</compile_context>

<pallas_src>
import math
import functools

import jax
import jax.numpy as jnp
from jax.experimental import pallas as pl
from jax.experimental.pallas import tpu as pltpu


def _gate_kernel(w_ref, u_ref, x_ref, h_ref, b_ref, o_ref, *, activation):
    # Two MXU matmuls accumulated in f32, then bias add + activation on the
    # VPU/EUP in f32 (bias is kept f32 regardless of matmul operand dtype).
    pre = jnp.dot(w_ref[...], x_ref[...], preferred_element_type=jnp.float32)
    pre = pre + jnp.dot(u_ref[...], h_ref[...], preferred_element_type=jnp.float32)
    o_ref[...] = activation(pre + b_ref[...]).astype(o_ref.dtype)


def mat_gru_gate(W, U, bias, x, hidden, activation=jax.nn.sigmoid, *,
                 matmul_dtype=None, tile_n=None):
    """activation(W @ x + U @ hidden + bias) as a single fused Pallas call.

    matmul_dtype: optional dtype (e.g. jnp.bfloat16) for the MXU operands;
                  accumulation and epilogue stay in f32.  In production this
                  cast belongs at parameter-init time, not per forward call.
    tile_n:       optional column tile width (multiple of 128) for wide cols;
                  None -> single full-array block (best for small shapes).
    """
    rows, cols = bias.shape
    assert W.shape == (rows, rows) and U.shape == (rows, rows)
    assert x.shape == (rows, cols) and hidden.shape == (rows, cols)

    if matmul_dtype is not None:
        W, U = W.astype(matmul_dtype), U.astype(matmul_dtype)
        x, hidden = x.astype(matmul_dtype), hidden.astype(matmul_dtype)

    if tile_n is not None and cols % tile_n == 0 and cols > tile_n:
        assert tile_n % 128 == 0, "tile_n must be a multiple of the 128-lane width"
        tile_cols = tile_n
    else:
        tile_cols = cols  # full-array block: legal at any width, no padding
    n_tiles = cols // tile_cols

    kernel = functools.partial(_gate_kernel, activation=activation)

    return pl.pallas_call(
        kernel,
        out_shape=jax.ShapeDtypeStruct((rows, cols), bias.dtype),
        grid=(n_tiles,),
        in_specs=[
            # Weights resident across all column tiles (constant index_map).
            pl.BlockSpec((rows, rows), lambda j: (0, 0)),
            pl.BlockSpec((rows, rows), lambda j: (0, 0)),
            # Activations / bias tile along the lane (cols) axis.
            pl.BlockSpec((rows, tile_cols), lambda j: (0, j)),
            pl.BlockSpec((rows, tile_cols), lambda j: (0, j)),
            pl.BlockSpec((rows, tile_cols), lambda j: (0, j)),
        ],
        out_specs=pl.BlockSpec((rows, tile_cols), lambda j: (0, j)),
        compiler_params=pltpu.CompilerParams(
            # Column tiles are independent -> shards across the 2 TensorCores
            # on v7x when n_tiles >= 2; harmless no-op for the 1-tile case.
            dimension_semantics=("parallel",),
        ),
    )(W, U, x, hidden, bias)


def init_params(key, rows, cols):
    # Mirrors reset_param: uniform(-stdv, stdv) with stdv = 1/sqrt(rows)
    # (W and U have size(1) == rows); bias starts at zero.
    kW, kU = jax.random.split(key)
    stdv = 1.0 / math.sqrt(rows)
    W = jax.random.uniform(kW, (rows, rows), jnp.float32, -stdv, stdv)
    U = jax.random.uniform(kU, (rows, rows), jnp.float32, -stdv, stdv)
    bias = jnp.zeros((rows, cols), jnp.float32)
    return W, U, bias


if __name__ == "__main__":
    rows, cols = 32, 16  # small shapes consistent with the module
    key = jax.random.PRNGKey(0)
    kp, kx, kh = jax.random.split(key, 3)

    W, U, bias = init_params(kp, rows, cols)
    x = jax.random.normal(kx, (rows, cols), jnp.float32)
    hidden = jax.random.normal(kh, (rows, cols), jnp.float32)

    # --- small-shape path: single full-block call, f32 operands -------------
    out = mat_gru_gate(W, U, bias, x, hidden, activation=jax.nn.sigmoid)
    out = jax.block_until_ready(out)

    ref = jax.nn.sigmoid(W @ x + U @ hidden + bias)
    assert out.shape == (rows, cols)
    assert jnp.allclose(out, ref, atol=1e-5, rtol=1e-5), "mismatch vs reference"

    # --- wide-cols path: column-tiled grid (2 tiles -> both TCs on v7x),
    #     bf16 MXU operands (v6e/v7x native), f32 accumulation + epilogue ----
    cols2 = 256
    bias2 = jnp.zeros((rows, cols2), jnp.float32)
    x2 = jax.random.normal(kx, (rows, cols2), jnp.float32)
    h2 = jax.random.normal(kh, (rows, cols2), jnp.float32)

    out2 = mat_gru_gate(W, U, bias2, x2, h2, activation=jax.nn.sigmoid,
                        matmul_dtype=jnp.bfloat16, tile_n=128)
    out2 = jax.block_until_ready(out2)

    ref2 = jax.nn.sigmoid(W @ x2 + U @ h2 + bias2)
    assert out2.shape == (rows, cols2)
    assert jnp.allclose(out2, ref2, atol=2e-2, rtol=2e-2), "bf16 path mismatch"

    print("KERNEL_OK")
</pallas_src>

<mosaic_0001>
module attributes {stable_mosaic.version = 11 : i64} {
  func.func @_gate_kernel(%arg0: i32, %arg1: memref<32x32xf32, #tpu.memory_space<vmem>>, %arg2: memref<32x32xf32, #tpu.memory_space<vmem>>, %arg3: memref<32x16xf32, #tpu.memory_space<vmem>>, %arg4: memref<32x16xf32, #tpu.memory_space<vmem>>, %arg5: memref<32x16xf32, #tpu.memory_space<vmem>>, %arg6: memref<32x16xf32, #tpu.memory_space<vmem>>) attributes {dimension_semantics = [#tpu.dimension_semantics<parallel>], iteration_bounds = array<i64: 1>, scalar_prefetch = 0 : i64, scratch_operands = 0 : i64, tpu.core_type = #tpu.core_type<tc>, window_params = [{pipeline_mode = #tpu.pipeline_mode<synchronous>, transform_indices = @transform_0, window_bounds = array<i64: 32, 32>}, {pipeline_mode = #tpu.pipeline_mode<synchronous>, transform_indices = @transform_1, window_bounds = array<i64: 32, 32>}, {transform_indices = @transform_2, window_bounds = array<i64: 32, 16>}, {transform_indices = @transform_3, window_bounds = array<i64: 32, 16>}, {transform_indices = @transform_4, window_bounds = array<i64: 32, 16>}, {transform_indices = @transform_5, window_bounds = array<i64: 32, 16>}]} {
    %c0 = arith.constant 0 : index
    %c0_0 = arith.constant 0 : index
    %0 = vector.load %arg1[%c0, %c0_0] : memref<32x32xf32, #tpu.memory_space<vmem>>, vector<32x32xf32>
    %c0_1 = arith.constant 0 : index
    %c0_2 = arith.constant 0 : index
    %1 = vector.load %arg3[%c0_1, %c0_2] : memref<32x16xf32, #tpu.memory_space<vmem>>, vector<32x16xf32>
    %cst = arith.constant dense<0.000000e+00> : vector<32x16xf32>
    %2 = tpu.matmul %0, %1, %cst {dimension_numbers = #tpu.dot_dimension_numbers<[1], [0], [0], [1], [0, 0, 1, 1], [], []>} : vector<32x32xf32>, vector<32x16xf32>, vector<32x16xf32> -> vector<32x16xf32>
    %c0_3 = arith.constant 0 : index
    %c0_4 = arith.constant 0 : index
    %3 = vector.load %arg2[%c0_3, %c0_4] : memref<32x32xf32, #tpu.memory_space<vmem>>, vector<32x32xf32>
    %c0_5 = arith.constant 0 : index
    %c0_6 = arith.constant 0 : index
    %4 = vector.load %arg4[%c0_5, %c0_6] : memref<32x16xf32, #tpu.memory_space<vmem>>, vector<32x16xf32>
    %cst_7 = arith.constant dense<0.000000e+00> : vector<32x16xf32>
    %5 = tpu.matmul %3, %4, %cst_7 {dimension_numbers = #tpu.dot_dimension_numbers<[1], [0], [0], [1], [0, 0, 1, 1], [], []>} : vector<32x32xf32>, vector<32x16xf32>, vector<32x16xf32> -> vector<32x16xf32>
    %6 = arith.addf %2, %5 : vector<32x16xf32>
    %c0_8 = arith.constant 0 : index
    %c0_9 = arith.constant 0 : index
    %7 = vector.load %arg5[%c0_8, %c0_9] : memref<32x16xf32, #tpu.memory_space<vmem>>, vector<32x16xf32>
    %8 = arith.addf %6, %7 : vector<32x16xf32>
    %9 = arith.negf %8 : vector<32x16xf32>
    %10 = math.exp %9 : vector<32x16xf32>
    %cst_10 = arith.constant 1.000000e+00 : f32
    %11 = vector.broadcast %cst_10 : f32 to vector<32x16xf32>
    %12 = arith.addf %11, %10 : vector<32x16xf32>
    %13 = arith.divf %11, %12 : vector<32x16xf32>
    %c0_11 = arith.constant 0 : index
    %c0_12 = arith.constant 0 : index
    %14 = vector.load %arg6[%c0_11, %c0_12] : memref<32x16xf32, #tpu.memory_space<vmem>>, vector<32x16xf32>
    tpu.vector_store %arg6[%c0_11, %c0_12], %13 {strides = array<i32>} : memref<32x16xf32, #tpu.memory_space<vmem>>, vector<32x16xf32>,
    return
  }
  func.func @transform_0(%arg0: i32) -> (i32, i32) {
    %c0_i32 = arith.constant 0 : i32
    %c0_i32_0 = arith.constant 0 : i32
    %c0_i32_1 = arith.constant 0 : i32
    return %c0_i32, %c0_i32_0 : i32, i32
  }
  func.func @transform_1(%arg0: i32) -> (i32, i32) {
    %c0_i32 = arith.constant 0 : i32
    %c0_i32_0 = arith.constant 0 : i32
    %c0_i32_1 = arith.constant 0 : i32
    return %c0_i32, %c0_i32_0 : i32, i32
  }
  func.func @transform_2(%arg0: i32) -> (i32, i32) {
    %c0_i32 = arith.constant 0 : i32
    %c0_i32_0 = arith.constant 0 : i32
    return %c0_i32, %arg0 : i32, i32
  }
  func.func @transform_3(%arg0: i32) -> (i32, i32) {
    %c0_i32 = arith.constant 0 : i32
    %c0_i32_0 = arith.constant 0 : i32
    return %c0_i32, %arg0 : i32, i32
  }
  func.func @transform_4(%arg0: i32) -> (i32, i32) {
    %c0_i32 = arith.constant 0 : i32
    %c0_i32_0 = arith.constant 0 : i32
    return %c0_i32, %arg0 : i32, i32
  }
  func.func @transform_5(%arg0: i32) -> (i32, i32) {
    %c0_i32 = arith.constant 0 : i32
    %c0_i32_0 = arith.constant 0 : i32
    return %c0_i32, %arg0 : i32, i32
  }
}

</mosaic_0001>

<llo_original>
// kernel: tpu_custom_call.1
$region0: #{tpu_custom_call.1}
  #allocation0 [shape = 'u32[]', space=smem, size = 0x4, offset = 0x4, fixed_abs, tag = 'smem constant byte address 0x4 - core index']
  #allocation1 [shape = 'u32[144,128]{1,0:T(1,128)}', space=vmem, size = 0x12000, scoped, tag = 'internal scratch']
  %s0 = inlined_call_operand.vmem [shape: f32[32,32], index: 0, kind: input, shape index: {}]
  %s1 = inlined_call_operand.vmem [shape: f32[32,32], index: 1, kind: input, shape index: {}]
  %s2 = inlined_call_operand.vmem [shape: f32[32,16], index: 2, kind: input, shape index: {}]
  %s3 = inlined_call_operand.vmem [shape: f32[32,16], index: 3, kind: input, shape index: {}]
  %s4 = inlined_call_operand.vmem [shape: f32[32,16], index: 4, kind: input, shape index: {}]
  %s5 = inlined_call_operand.vmem [shape: f32[32,16], index: 5, kind: output, shape index: {}]
  %s6 = sld [smem:[#allocation0]]
  $region30: #{tpu_custom_call.1} parent=0
    _
  %s8 = ssub.s32 1, %s6
  %s9 = scalar_select 0, %s8, %s6
  // Predicated region
  $region2: #{tpu_custom_call.1} parent=0 // pred_check
    _
  $region3: #{tpu_custom_call.1} parent=0 // pred_check_branch
    %11 = sbr.rel (0) target = $region5
  $region4: #{tpu_custom_call.1} parent=0 // pred_region
    _
  $region5: #{tpu_custom_call.1} parent=0 // pred_fallthru
    _
  // Predicated region
  $region6: #{tpu_custom_call.1} parent=0 // pred_check
    _
  $region7: #{tpu_custom_call.1} parent=0 // pred_check_branch
    %13 = sbr.rel (0) target = $region9
  $region8: #{tpu_custom_call.1} parent=0 // pred_region
    _
  $region9: #{tpu_custom_call.1} parent=0 // pred_fallthru
    _
  // Predicated region
  $region10: #{tpu_custom_call.1} parent=0 // pred_check
    _
  $region11: #{tpu_custom_call.1} parent=0 // pred_check_branch
    %15 = sbr.rel (0) target = $region13
  $region12: #{tpu_custom_call.1} parent=0 // pred_region
    _
  $region13: #{tpu_custom_call.1} parent=0 // pred_fallthru
    _
  // Predicated region
  $region14: #{tpu_custom_call.1} parent=0 // pred_check
    _
  $region15: #{tpu_custom_call.1} parent=0 // pred_check_branch
    %17 = sbr.rel (0) target = $region17
  $region16: #{tpu_custom_call.1} parent=0 // pred_region
    _
  $region17: #{tpu_custom_call.1} parent=0 // pred_fallthru
    _
  // Predicated region
  $region18: #{tpu_custom_call.1} parent=0 // pred_check
    _
  $region19: #{tpu_custom_call.1} parent=0 // pred_check_branch
    %19 = sbr.rel (0) target = $region21
  $region20: #{tpu_custom_call.1} parent=0 // pred_region
    _
  $region21: #{tpu_custom_call.1} parent=0 // pred_fallthru
    _
  %v20 = vld [vmem:[%s0] sm:$0xff]
  %v21 = vld [vmem:[%s0 + $0x8] sm:$0xff]
  %v22 = vld [vmem:[%s0 + $0x10] sm:$0xff]
  %v23 = vld [vmem:[%s0 + $0x18] sm:$0xff]
  %v24 = vld [vmem:[%s2] sm:$0xff]
  %v25 = vld [vmem:[%s2 + $0x8] sm:$0xff]
  %v26 = vld [vmem:[%s2 + $0x10] sm:$0xff]
  %v27 = vld [vmem:[%s2 + $0x18] sm:$0xff]
  %v28 = vld [vmem:[%s1] sm:$0xff]
  %v29 = vld [vmem:[%s1 + $0x8] sm:$0xff]
  %v30 = vld [vmem:[%s1 + $0x10] sm:$0xff]
  %v31 = vld [vmem:[%s1 + $0x18] sm:$0xff]
  %v32 = vld [vmem:[%s3] sm:$0xff]
  %v33 = vld [vmem:[%s3 + $0x8] sm:$0xff]
  %v34 = vld [vmem:[%s3 + $0x10] sm:$0xff]
  %v35 = vld [vmem:[%s3 + $0x18] sm:$0xff]
  %vm36 = vcmask 261120
  %v38 = vsel %vm36, %v28, 0
  %v41 = vsel %vm36, %v29, 0
  %v44 = vsel %vm36, %v30, 0
  %v47 = vsel %vm36, %v31, 0
  %49 = vmatprep.subr.mxu0 0.0
  %50 = vmatpush1.msra.mxu0 %v32
  %51 = vmatprep.subr.mxu0 0.0
  %52 = vmatpush1.msra.mxu0 %v33
  %53 = vmatprep.subr.mxu0 0.0
  %54 = vmatpush1.msra.mxu0 %v34
  %55 = vmatprep.subr.mxu0 0.0
  %56 = vmatpush1.msra.mxu0 %v35
  %57 = vmatprep.subr.mxu0 0.0
  %58 = vmatpush1.msra.mxu0 0.0
  %59 = vmatprep.subr.mxu0 0.0
  %60 = vmatpush1.msra.mxu0 0.0
  %61 = vmatprep.subr.mxu0 0.0
  %62 = vmatpush1.msra.mxu0 0.0
  %63 = vmatprep.subr.mxu0 0.0
  %64 = vmatpush1.msra.mxu0 0.0
  %65 = vmatprep.subr.mxu0 0.0
  %66 = vmatpush1.msra.mxu0 0.0
  %67 = vmatprep.subr.mxu0 0.0
  %68 = vmatpush1.msra.mxu0 0.0
  %69 = vmatprep.subr.mxu0 0.0
  %70 = vmatpush1.msra.mxu0 0.0
  %71 = vmatprep.subr.mxu0 0.0
  %72 = vmatpush1.msra.mxu0 0.0
  %73 = vmatprep.subr.mxu0 0.0
  %74 = vmatpush1.msra.mxu0 0.0
  %75 = vmatprep.subr.mxu0 0.0
  %76 = vmatpush1.msra.mxu0 0.0
  %77 = vmatprep.subr.mxu0 0.0
  %78 = vmatpush1.msra.mxu0 0.0
  %79 = vmatprep.subr.mxu0 0.0
  %80 = vmatpush1.msra.mxu0 0.0
  %81 = vmatprep.subr.mxu0 0.0
  %82 = vmatpush1.msra.mxu0 0.0
  %83 = vmatprep.subr.mxu0 0.0
  %84 = vmatpush1.msra.mxu0 0.0
  %85 = vmatprep.subr.mxu0 0.0
  %86 = vmatpush1.msra.mxu0 0.0
  %87 = vmatprep.subr.mxu0 0.0
  %88 = vmatpush1.msra.mxu0 0.0
  %89 = vmatprep.subr.mxu0 0.0
  %90 = vmatpush1.msra.mxu0 0.0
  %91 = vmatprep.subr.mxu0 0.0
  %92 = vmatpush1.msra.mxu0 0.0
  %93 = vmatprep.subr.mxu0 0.0
  %94 = vmatpush1.msra.mxu0 0.0
  %95 = vmatprep.subr.mxu0 0.0
  %96 = vmatpush1.msra.mxu0 0.0
  %97 = vmatprep.subr.mxu0 0.0
  %98 = vmatpush1.msra.mxu0 0.0
  %99 = vmatprep.subr.mxu0 0.0
  %100 = vmatpush1.msra.mxu0 0.0
  %101 = vmatprep.subr.mxu0 0.0
  %102 = vmatpush1.msra.mxu0 0.0
  %103 = vmatprep.subr.mxu0 0.0
  %104 = vmatpush1.msra.mxu0 0.0
  %105 = vmatprep.subr.mxu0 0.0
  %106 = vmatpush1.msra.mxu0 0.0
  %107 = vmatprep.subr.mxu0 0.0
  %108 = vmatpush1.msra.mxu0 0.0
  %109 = vmatprep.subr.mxu0 0.0
  %110 = vmatpush1.msra.mxu0 0.0
  %111 = vmatprep.subr.mxu0 0.0
  %112 = vmatpush1.msra.mxu0 0.0
  %113 = vmatprep.mubr.f32.mxu0 0.0
  %114 = vmatmul.mubr.f32.gmra.mrb[0].mxu0 %v38
  %v115 = vpop.f32.mrb[0].mxu0
  %v116 = vadd.f32 0.0, %v115
  %v117 = vpop.f32.mrb[0].mxu0
  %118 = vmatprep.mubr.f32.mxu0 0.0
  %119 = vmatmul.mubr.f32.gmra.mrb[0].mxu0 %v41
  %v120 = vpop.f32.mrb[0].mxu0
  %v121 = vadd.f32 0.0, %v120
  %v122 = vpop.f32.mrb[0].mxu0
  %123 = vmatprep.mubr.f32.mxu0 0.0
  %124 = vmatmul.mubr.f32.gmra.mrb[0].mxu0 %v44
  %v125 = vpop.f32.mrb[0].mxu0
  %v126 = vadd.f32 0.0, %v125
  %v127 = vpop.f32.mrb[0].mxu0
  %128 = vmatprep.mubr.f32.mxu0 0.0
  %129 = vmatmul.mubr.f32.gmra.mrb[0].mxu0 %v47
  %v130 = vpop.f32.mrb[0].mxu0
  %v131 = vadd.f32 0.0, %v130
  %v132 = vpop.f32.mrb[0].mxu0
  %133 = vdwg.mxu0
  %v135 = vsel %vm36, %v20, 0
  %v138 = vsel %vm36, %v21, 0
  %v141 = vsel %vm36, %v22, 0
  %v144 = vsel %vm36, %v23, 0
  %146 = vmatprep.subr.mxu0 0.0
  %147 = vmatpush1.msra.mxu0 %v24
  %148 = vmatprep.subr.mxu0 0.0
  %149 = vmatpush1.msra.mxu0 %v25
  %150 = vmatprep.subr.mxu0 0.0
  %151 = vmatpush1.msra.mxu0 %v26
  %152 = vmatprep.subr.mxu0 0.0
  %153 = vmatpush1.msra.mxu0 %v27
  %154 = vmatprep.subr.mxu0 0.0
  %155 = vmatpush1.msra.mxu0 0.0
  %156 = vmatprep.subr.mxu0 0.0
  %157 = vmatpush1.msra.mxu0 0.0
  %158 = vmatprep.subr.mxu0 0.0
  %159 = vmatpush1.msra.mxu0 0.0
  %160 = vmatprep.subr.mxu0 0.0
  %161 = vmatpush1.msra.mxu0 0.0
  %162 = vmatprep.subr.mxu0 0.0
  %163 = vmatpush1.msra.mxu0 0.0
  %164 = vmatprep.subr.mxu0 0.0
  %165 = vmatpush1.msra.mxu0 0.0
  %166 = vmatprep.subr.mxu0 0.0
  %167 = vmatpush1.msra.mxu0 0.0
  %168 = vmatprep.subr.mxu0 0.0
  %169 = vmatpush1.msra.mxu0 0.0
  %170 = vmatprep.subr.mxu0 0.0
  %171 = vmatpush1.msra.mxu0 0.0
  %172 = vmatprep.subr.mxu0 0.0
  %173 = vmatpush1.msra.mxu0 0.0
  %174 = vmatprep.subr.mxu0 0.0
  %175 = vmatpush1.msra.mxu0 0.0
  %176 = vmatprep.subr.mxu0 0.0
  %177 = vmatpush1.msra.mxu0 0.0
  %178 = vmatprep.subr.mxu0 0.0
  %179 = vmatpush1.msra.mxu0 0.0
  %180 = vmatprep.subr.mxu0 0.0
  %181 = vmatpush1.msra.mxu0 0.0
  %182 = vmatprep.subr.mxu0 0.0
  %183 = vmatpush1.msra.mxu0 0.0
  %184 = vmatprep.subr.mxu0 0.0
  %185 = vmatpush1.msra.mxu0 0.0
  %186 = vmatprep.subr.mxu0 0.0
  %187 = vmatpush1.msra.mxu0 0.0
  %188 = vmatprep.subr.mxu0 0.0
  %189 = vmatpush1.msra.mxu0 0.0
  %190 = vmatprep.subr.mxu0 0.0
  %191 = vmatpush1.msra.mxu0 0.0
  %192 = vmatprep.subr.mxu0 0.0
  %193 = vmatpush1.msra.mxu0 0.0
  %194 = vmatprep.subr.mxu0 0.0
  %195 = vmatpush1.msra.mxu0 0.0
  %196 = vmatprep.subr.mxu0 0.0
  %197 = vmatpush1.msra.mxu0 0.0
  %198 = vmatprep.subr.mxu0 0.0
  %199 = vmatpush1.msra.mxu0 0.0
  %200 = vmatprep.subr.mxu0 0.0
  %201 = vmatpush1.msra.mxu0 0.0
  %202 = vmatprep.subr.mxu0 0.0
  %203 = vmatpush1.msra.mxu0 0.0
  %204 = vmatprep.subr.mxu0 0.0
  %205 = vmatpush1.msra.mxu0 0.0
  %206 = vmatprep.subr.mxu0 0.0
  %207 = vmatpush1.msra.mxu0 0.0
  %208 = vmatprep.subr.mxu0 0.0
  %209 = vmatpush1.msra.mxu0 0.0
  %210 = vmatprep.mubr.f32.mxu0 0.0
  %211 = vmatmul.mubr.f32.gmra.mrb[0].mxu0 %v135
  %v212 = vpop.f32.mrb[0].mxu0
  %v213 = vadd.f32 %v116, %v212
  %v214 = vpop.f32.mrb[0].mxu0
  %215 = vmatprep.mubr.f32.mxu0 0.0
  %216 = vmatmul.mubr.f32.gmra.mrb[0].mxu0 %v138
  %v217 = vpop.f32.mrb[0].mxu0
  %v218 = vadd.f32 %v121, %v217
  %v219 = vpop.f32.mrb[0].mxu0
  %220 = vmatprep.mubr.f32.mxu0 0.0
  %221 = vmatmul.mubr.f32.gmra.mrb[0].mxu0 %v141
  %v222 = vpop.f32.mrb[0].mxu0
  %v223 = vadd.f32 %v126, %v222
  %v224 = vpop.f32.mrb[0].mxu0
  %225 = vmatprep.mubr.f32.mxu0 0.0
  %226 = vmatmul.mubr.f32.gmra.mrb[0].mxu0 %v144
  %v227 = vpop.f32.mrb[0].mxu0
  %v228 = vadd.f32 %v131, %v227
  %v229 = vpop.f32.mrb[0].mxu0
  %230 = vdwg.mxu0
  %v231 = vld [vmem:[%s4] sm:$0xff]
  %v232 = vld [vmem:[%s4 + $0x8] sm:$0xff]
  %v233 = vld [vmem:[%s4 + $0x10] sm:$0xff]
  %v234 = vld [vmem:[%s4 + $0x18] sm:$0xff]
  %v235 = vadd.f32 %v213, %v231
  %v236 = vadd.f32 %v218, %v232
  %v237 = vadd.f32 %v223, %v233
  %v238 = vadd.f32 %v228, %v234
  %v239 = vxor.u32 %v235, 2147483648
  %v240 = vxor.u32 %v236, 2147483648
  %v241 = vxor.u32 %v237, 2147483648
  %v242 = vxor.u32 %v238, 2147483648
  %v243 = vmul.f32 %v239, 1.442695
  %v244 = vpow.pop %v243
  %v245 = vmul.f32 %v240, 1.442695
  %v246 = vpow.pop %v245
  %v247 = vmul.f32 %v241, 1.442695
  %v248 = vpow.pop %v247
  %v249 = vmul.f32 %v242, 1.442695
  %v250 = vpow.pop %v249
  %v251 = vadd.f32 %v244, 1.0
  %v252 = vadd.f32 %v246, 1.0
  %v253 = vadd.f32 %v248, 1.0
  %v254 = vadd.f32 %v250, 1.0
  %v255 = vrcp.pop %v251
  %v256 = vmul.f32 1.0, %v255
  %v257 = vrcp.pop %v252
  %v258 = vmul.f32 1.0, %v257
  %v259 = vrcp.pop %v253
  %v260 = vmul.f32 1.0, %v259
  %v261 = vrcp.pop %v254
  %v262 = vmul.f32 1.0, %v261
  %vm263 = vcmask 130048
  %264 = vst.msk [vmem:[%s5] sm:$0xff] %vm263, %v256
  %265 = vst.msk [vmem:[%s5 + $0x8] sm:$0xff] %vm263, %v258
  %266 = vst.msk [vmem:[%s5 + $0x10] sm:$0xff] %vm263, %v260
  %267 = vst.msk [vmem:[%s5 + $0x18] sm:$0xff] %vm263, %v262
  // Predicated region
  $region22: #{tpu_custom_call.1} parent=0 // pred_check
    _
  $region23: #{tpu_custom_call.1} parent=0 // pred_check_branch
    %269 = sbr.rel (0) target = $region25
  $region24: #{tpu_custom_call.1} parent=0 // pred_region
    _
  $region25: #{tpu_custom_call.1} parent=0 // pred_fallthru
    _
  // Predicated region
  $region26: #{tpu_custom_call.1} parent=0 // pred_check
    _
  $region27: #{tpu_custom_call.1} parent=0 // pred_check_branch
    %271 = sbr.rel (0) target = $region29
  $region28: #{tpu_custom_call.1} parent=0 // pred_region
    _
  $region29: #{tpu_custom_call.1} parent=0 // pred_fallthru
    _

</llo_original>
